<compile_context>
chip_gen: v6e
topology: v6e:2x2x1
jax: 0.10.0
libtpu: 0.0.40
codegen_flags: <defaults>
</compile_context>

<pallas_src>
import jax
import jax.numpy as jnp
import numpy as np
from jax.experimental import pallas as pl
from jax.experimental.pallas import tpu as pltpu

# ---------------------------------------------------------------------------
# Model dimensions (small synthetic wav2vec2-for-CTC stand-in)
# ---------------------------------------------------------------------------
B = 2            # batch
T_AUDIO = 512    # raw waveform samples
K = 8            # conv kernel size == stride  -> unfold is a reshape
T_FRAMES = T_AUDIO // K   # 64 frames
C_FEAT = 32      # conv feature channels
HIDDEN = 64      # encoder hidden size
VOCAB = 32       # CTC vocab size
N_ROWS = B * T_FRAMES     # 128 frames total -> sublane axis inside the kernel
EPS = 1e-8


def _gelu(x):
    return jax.nn.gelu(x, approximate=True)


# ---------------------------------------------------------------------------
# Pallas kernel: full forward hot path + entropy reduction (one grid step)
# ---------------------------------------------------------------------------
def asr_kernel(frames_ref, wc_ref, w1_ref, w2_ref, bc_ref, b1_ref, b2_ref,
               logits_ref, ent_ref):
    # Frames arrive as the natural row-major (N, K) view of the waveform:
    # no wrapper transpose and no in-kernel XLU transpose needed.
    frames = frames_ref[...].astype(jnp.bfloat16)                           # [N, K]

    # conv1d (kernel==stride) as matmul + bias + GELU -> features
    feat = _gelu(jnp.dot(frames, wc_ref[...].astype(jnp.bfloat16),
                         preferred_element_type=jnp.float32) + bc_ref[...])   # [N, C]
    # encoder projection + GELU -> hidden
    hid = _gelu(jnp.dot(feat.astype(jnp.bfloat16),
                        w1_ref[...].astype(jnp.bfloat16),
                        preferred_element_type=jnp.float32) + b1_ref[...])    # [N, H]
    # lm_head -> logits
    logits = jnp.dot(hid.astype(jnp.bfloat16),
                     w2_ref[...].astype(jnp.bfloat16),
                     preferred_element_type=jnp.float32) + b2_ref[...]        # [N, V]

    # (N, V) store: masked 32-lane stores, cheaper than a standalone XLA
    # transpose + extra HBM round trip on the wrapper side at these dims.
    logits_ref[...] = logits

    # Per-frame entropy from the shifted logits (stable LSE identity):
    #   H = log(s) - sum(e * (l - m)) / s,   e = exp(l - m), s = sum(e)
    m = jnp.max(logits, axis=-1, keepdims=True)                             # [N, 1]
    shifted = logits - m                                                    # [N, V]
    e = jnp.exp(shifted)                                                    # [N, V]
    s = jnp.sum(e, axis=-1, keepdims=True)                                  # [N, 1]
    inv_s = pl.reciprocal(s, approx=True)                                   # EUP, ~free slot
    ent_frame = jnp.log(s) - jnp.sum(e * shifted, axis=-1, keepdims=True) * inv_s
    ent_ref[...] = jnp.sum(ent_frame, axis=0, keepdims=True) * jnp.float32(1.0 / N_ROWS)


# ---------------------------------------------------------------------------
# Wrapper: only free reshapes + the pallas_call (no standalone XLA ops)
# ---------------------------------------------------------------------------
def adaptive_wav2vec2_forward(input_values, params):
    wc, bc, w1, b1, w2, b2 = params

    # frames[b*T_F + t, k] = input[b, t*K + k]  -- contiguous view, no transpose.
    frames = input_values.reshape(N_ROWS, K)

    logits_nv, entropy = pl.pallas_call(
        asr_kernel,
        out_shape=(
            jax.ShapeDtypeStruct((N_ROWS, VOCAB), jnp.float32),   # frame-major logits
            jax.ShapeDtypeStruct((1, 1), jnp.float32),            # mean entropy
        ),
        grid=(1,),
        in_specs=[
            pl.BlockSpec((N_ROWS, K), lambda i: (0, 0)),          # frames (row-major view)
            pl.BlockSpec((K, C_FEAT), lambda i: (0, 0)),          # conv weight
            pl.BlockSpec((C_FEAT, HIDDEN), lambda i: (0, 0)),     # encoder weight
            pl.BlockSpec((HIDDEN, VOCAB), lambda i: (0, 0)),      # lm_head weight
            pl.BlockSpec((1, C_FEAT), lambda i: (0, 0)),          # conv bias (lane row)
            pl.BlockSpec((1, HIDDEN), lambda i: (0, 0)),          # encoder bias
            pl.BlockSpec((1, VOCAB), lambda i: (0, 0)),           # lm_head bias
        ],
        out_specs=(
            pl.BlockSpec((N_ROWS, VOCAB), lambda i: (0, 0)),
            pl.BlockSpec((1, 1), lambda i: (0, 0)),
        ),
        compiler_params=pltpu.CompilerParams(dimension_semantics=("arbitrary",)),
    )(frames, wc, w1, w2, bc, b1, b2)

    logits = logits_nv.reshape(B, T_FRAMES, VOCAB)   # == outputs.logits (free reshape)
    # TODO(synk): Adam update of wav2vec2 params from the entropy loss is
    # omitted (see header); the returned logits do not depend on it.
    return logits, entropy[0, 0]


# ---------------------------------------------------------------------------
# Pure-JAX reference (mirrors the kernel's bf16-matmul / f32-elementwise policy)
# ---------------------------------------------------------------------------
def reference_forward(input_values, params):
    wc, bc, w1, b1, w2, b2 = params
    frames = input_values.reshape(N_ROWS, K)
    feat = _gelu(jnp.dot(frames.astype(jnp.bfloat16), wc.astype(jnp.bfloat16),
                         preferred_element_type=jnp.float32) + bc)
    hid = _gelu(jnp.dot(feat.astype(jnp.bfloat16), w1.astype(jnp.bfloat16),
                        preferred_element_type=jnp.float32) + b1)
    logits = (jnp.dot(hid.astype(jnp.bfloat16), w2.astype(jnp.bfloat16),
                      preferred_element_type=jnp.float32) + b2).reshape(B, T_FRAMES, VOCAB)
    probs = jax.nn.softmax(logits, axis=-1)
    entropy = (-jnp.sum(probs * jnp.log(probs + EPS), axis=-1)).mean()
    return logits, entropy


# ---------------------------------------------------------------------------
# Deterministic parameter init (shapes implied by the synthetic model)
# ---------------------------------------------------------------------------
def init_params(key):
    ks = jax.random.split(key, 6)
    wc = 0.1 * jax.random.normal(ks[0], (K, C_FEAT), jnp.float32)       # conv weight (taps x out_ch)
    bc = 0.01 * jax.random.normal(ks[1], (1, C_FEAT), jnp.float32)
    w1 = 0.1 * jax.random.normal(ks[2], (C_FEAT, HIDDEN), jnp.float32)  # encoder proj
    b1 = 0.01 * jax.random.normal(ks[3], (1, HIDDEN), jnp.float32)
    w2 = 0.1 * jax.random.normal(ks[4], (HIDDEN, VOCAB), jnp.float32)   # lm_head
    b2 = 0.01 * jax.random.normal(ks[5], (1, VOCAB), jnp.float32)
    return (wc, bc, w1, b1, w2, b2)


if __name__ == "__main__":
    root = jax.random.PRNGKey(0)
    k_in, k_par = jax.random.split(root)
    input_values = jax.random.normal(k_in, (B, T_AUDIO), jnp.float32)
    params = init_params(k_par)

    logits, entropy = adaptive_wav2vec2_forward(input_values, params)
    jax.block_until_ready((logits, entropy))

    ref_logits, ref_entropy = reference_forward(input_values, params)
    # Tolerance covers one-ulp bf16 intermediate rounding differences between
    # Mosaic and XLA, the approximate EUP reciprocal in the entropy path, and
    # the dropped +1e-8 epsilon.
    np.testing.assert_allclose(np.asarray(logits), np.asarray(ref_logits),
                               rtol=5e-3, atol=5e-3)
    np.testing.assert_allclose(float(entropy), float(ref_entropy),
                               rtol=5e-3, atol=5e-3)

    print("KERNEL_OK")
</pallas_src>

<mosaic_0001>
module attributes {stable_mosaic.version = 11 : i64} {
  func.func @asr_kernel(%arg0: i32, %arg1: memref<128x8xf32, #tpu.memory_space<vmem>>, %arg2: memref<8x32xf32, #tpu.memory_space<vmem>>, %arg3: memref<32x64xf32, #tpu.memory_space<vmem>>, %arg4: memref<64x32xf32, #tpu.memory_space<vmem>>, %arg5: memref<1x32xf32, #tpu.memory_space<vmem>>, %arg6: memref<1x64xf32, #tpu.memory_space<vmem>>, %arg7: memref<1x32xf32, #tpu.memory_space<vmem>>, %arg8: memref<128x32xf32, #tpu.memory_space<vmem>>, %arg9: memref<1x1xf32, #tpu.memory_space<vmem>>) attributes {dimension_semantics = [#tpu.dimension_semantics<arbitrary>], iteration_bounds = array<i64: 1>, scalar_prefetch = 0 : i64, scratch_operands = 0 : i64, tpu.core_type = #tpu.core_type<tc>, window_params = [{pipeline_mode = #tpu.pipeline_mode<synchronous>, transform_indices = @transform_0, window_bounds = array<i64: 128, 8>}, {pipeline_mode = #tpu.pipeline_mode<synchronous>, transform_indices = @transform_1, window_bounds = array<i64: 8, 32>}, {pipeline_mode = #tpu.pipeline_mode<synchronous>, transform_indices = @transform_2, window_bounds = array<i64: 32, 64>}, {pipeline_mode = #tpu.pipeline_mode<synchronous>, transform_indices = @transform_3, window_bounds = array<i64: 64, 32>}, {pipeline_mode = #tpu.pipeline_mode<synchronous>, transform_indices = @transform_4, window_bounds = array<i64: 1, 32>}, {pipeline_mode = #tpu.pipeline_mode<synchronous>, transform_indices = @transform_5, window_bounds = array<i64: 1, 64>}, {pipeline_mode = #tpu.pipeline_mode<synchronous>, transform_indices = @transform_6, window_bounds = array<i64: 1, 32>}, {pipeline_mode = #tpu.pipeline_mode<synchronous>, transform_indices = @transform_7, window_bounds = array<i64: 128, 32>}, {pipeline_mode = #tpu.pipeline_mode<synchronous>, transform_indices = @transform_8, window_bounds = array<i64: 1, 1>}]} {
    %c0 = arith.constant 0 : index
    %c0_0 = arith.constant 0 : index
    %0 = vector.load %arg1[%c0, %c0_0] : memref<128x8xf32, #tpu.memory_space<vmem>>, vector<128x8xf32>
    %1 = arith.truncf %0 : vector<128x8xf32> to vector<128x8xbf16>
    %c0_1 = arith.constant 0 : index
    %c0_2 = arith.constant 0 : index
    %2 = vector.load %arg2[%c0_1, %c0_2] : memref<8x32xf32, #tpu.memory_space<vmem>>, vector<8x32xf32>
    %3 = arith.truncf %2 : vector<8x32xf32> to vector<8x32xbf16>
    %cst = arith.constant dense<0.000000e+00> : vector<128x32xf32>
    %4 = tpu.matmul %1, %3, %cst {dimension_numbers = #tpu.dot_dimension_numbers<[1], [0], [0], [1], [0, 0, 1, 1], [], []>} : vector<128x8xbf16>, vector<8x32xbf16>, vector<128x32xf32> -> vector<128x32xf32>
    %c0_3 = arith.constant 0 : index
    %c0_4 = arith.constant 0 : index
    %5 = vector.load %arg5[%c0_3, %c0_4] : memref<1x32xf32, #tpu.memory_space<vmem>>, vector<1x32xf32>
    %6 = vector.broadcast %5 : vector<1x32xf32> to vector<128x32xf32>
    %7 = arith.addf %4, %6 : vector<128x32xf32>
    %8 = arith.mulf %7, %7 : vector<128x32xf32>
    %9 = arith.mulf %7, %8 : vector<128x32xf32>
    %cst_5 = arith.constant 4.471500e-02 : f32
    %10 = vector.broadcast %cst_5 : f32 to vector<128x32xf32>
    %11 = arith.mulf %10, %9 : vector<128x32xf32>
    %12 = arith.addf %7, %11 : vector<128x32xf32>
    %cst_6 = arith.constant 0.797884583 : f32
    %13 = vector.broadcast %cst_6 : f32 to vector<128x32xf32>
    %14 = arith.mulf %13, %12 : vector<128x32xf32>
    %15 = math.tanh %14 : vector<128x32xf32>
    %cst_7 = arith.constant 1.000000e+00 : f32
    %16 = vector.broadcast %cst_7 : f32 to vector<128x32xf32>
    %17 = arith.addf %16, %15 : vector<128x32xf32>
    %cst_8 = arith.constant 5.000000e-01 : f32
    %18 = vector.broadcast %cst_8 : f32 to vector<128x32xf32>
    %19 = arith.mulf %18, %17 : vector<128x32xf32>
    %20 = arith.mulf %7, %19 : vector<128x32xf32>
    %21 = arith.truncf %20 : vector<128x32xf32> to vector<128x32xbf16>
    %c0_9 = arith.constant 0 : index
    %c0_10 = arith.constant 0 : index
    %22 = vector.load %arg3[%c0_9, %c0_10] : memref<32x64xf32, #tpu.memory_space<vmem>>, vector<32x64xf32>
    %23 = arith.truncf %22 : vector<32x64xf32> to vector<32x64xbf16>
    %cst_11 = arith.constant dense<0.000000e+00> : vector<128x64xf32>
    %24 = tpu.matmul %21, %23, %cst_11 {dimension_numbers = #tpu.dot_dimension_numbers<[1], [0], [0], [1], [0, 0, 1, 1], [], []>} : vector<128x32xbf16>, vector<32x64xbf16>, vector<128x64xf32> -> vector<128x64xf32>
    %c0_12 = arith.constant 0 : index
    %c0_13 = arith.constant 0 : index
    %25 = vector.load %arg6[%c0_12, %c0_13] : memref<1x64xf32, #tpu.memory_space<vmem>>, vector<1x64xf32>
    %26 = vector.broadcast %25 : vector<1x64xf32> to vector<128x64xf32>
    %27 = arith.addf %24, %26 : vector<128x64xf32>
    %28 = arith.mulf %27, %27 : vector<128x64xf32>
    %29 = arith.mulf %27, %28 : vector<128x64xf32>
    %cst_14 = arith.constant 4.471500e-02 : f32
    %30 = vector.broadcast %cst_14 : f32 to vector<128x64xf32>
    %31 = arith.mulf %30, %29 : vector<128x64xf32>
    %32 = arith.addf %27, %31 : vector<128x64xf32>
    %cst_15 = arith.constant 0.797884583 : f32
    %33 = vector.broadcast %cst_15 : f32 to vector<128x64xf32>
    %34 = arith.mulf %33, %32 : vector<128x64xf32>
    %35 = math.tanh %34 : vector<128x64xf32>
    %cst_16 = arith.constant 1.000000e+00 : f32
    %36 = vector.broadcast %cst_16 : f32 to vector<128x64xf32>
    %37 = arith.addf %36, %35 : vector<128x64xf32>
    %cst_17 = arith.constant 5.000000e-01 : f32
    %38 = vector.broadcast %cst_17 : f32 to vector<128x64xf32>
    %39 = arith.mulf %38, %37 : vector<128x64xf32>
    %40 = arith.mulf %27, %39 : vector<128x64xf32>
    %41 = arith.truncf %40 : vector<128x64xf32> to vector<128x64xbf16>
    %c0_18 = arith.constant 0 : index
    %c0_19 = arith.constant 0 : index
    %42 = vector.load %arg4[%c0_18, %c0_19] : memref<64x32xf32, #tpu.memory_space<vmem>>, vector<64x32xf32>
    %43 = arith.truncf %42 : vector<64x32xf32> to vector<64x32xbf16>
    %cst_20 = arith.constant dense<0.000000e+00> : vector<128x32xf32>
    %44 = tpu.matmul %41, %43, %cst_20 {dimension_numbers = #tpu.dot_dimension_numbers<[1], [0], [0], [1], [0, 0, 1, 1], [], []>} : vector<128x64xbf16>, vector<64x32xbf16>, vector<128x32xf32> -> vector<128x32xf32>
    %c0_21 = arith.constant 0 : index
    %c0_22 = arith.constant 0 : index
    %45 = vector.load %arg7[%c0_21, %c0_22] : memref<1x32xf32, #tpu.memory_space<vmem>>, vector<1x32xf32>
    %46 = vector.broadcast %45 : vector<1x32xf32> to vector<128x32xf32>
    %47 = arith.addf %44, %46 : vector<128x32xf32>
    %c0_23 = arith.constant 0 : index
    %c0_24 = arith.constant 0 : index
    %48 = vector.load %arg8[%c0_23, %c0_24] : memref<128x32xf32, #tpu.memory_space<vmem>>, vector<128x32xf32>
    tpu.vector_store %arg8[%c0_23, %c0_24], %47 {strides = array<i32>} : memref<128x32xf32, #tpu.memory_space<vmem>>, vector<128x32xf32>,
    %cst_25 = arith.constant dense<0xFF800000> : vector<128xf32>
    %49 = vector.multi_reduction <maximumf>, %47, %cst_25 [1] : vector<128x32xf32> to vector<128xf32>
    %50 = vector.shape_cast %49 : vector<128xf32> to vector<128x1xf32>
    %51 = vector.broadcast %50 : vector<128x1xf32> to vector<128x32xf32>
    %52 = arith.subf %47, %51 : vector<128x32xf32>
    %53 = math.exp %52 : vector<128x32xf32>
    %cst_26 = arith.constant dense<0.000000e+00> : vector<128xf32>
    %54 = vector.multi_reduction <add>, %53, %cst_26 [1] : vector<128x32xf32> to vector<128xf32>
    %55 = vector.shape_cast %54 : vector<128xf32> to vector<128x1xf32>
    %56 = tpu.reciprocal %55 {approx = true} : vector<128x1xf32> -> vector<128x1xf32>
    %57 = math.log %55 : vector<128x1xf32>
    %58 = arith.mulf %53, %52 : vector<128x32xf32>
    %cst_27 = arith.constant dense<0.000000e+00> : vector<128xf32>
    %59 = vector.multi_reduction <add>, %58, %cst_27 [1] : vector<128x32xf32> to vector<128xf32>
    %60 = vector.shape_cast %59 : vector<128xf32> to vector<128x1xf32>
    %61 = arith.mulf %60, %56 : vector<128x1xf32>
    %62 = arith.subf %57, %61 : vector<128x1xf32>
    %cst_28 = arith.constant dense<0.000000e+00> : vector<1xf32>
    %63 = vector.multi_reduction <add>, %62, %cst_28 [0] : vector<128x1xf32> to vector<1xf32>
    %64 = vector.shape_cast %63 : vector<1xf32> to vector<1x1xf32>
    %cst_29 = arith.constant 7.812500e-03 : f32
    %65 = vector.broadcast %cst_29 : f32 to vector<1x1xf32>
    %66 = arith.mulf %64, %65 : vector<1x1xf32>
    %c0_30 = arith.constant 0 : index
    %c0_31 = arith.constant 0 : index
    %67 = vector.load %arg9[%c0_30, %c0_31] : memref<1x1xf32, #tpu.memory_space<vmem>>, vector<1x1xf32>
    tpu.vector_store %arg9[%c0_30, %c0_31], %66 {strides = array<i32>} : memref<1x1xf32, #tpu.memory_space<vmem>>, vector<1x1xf32>,
    return
  }
  func.func @transform_0(%arg0: i32) -> (i32, i32) {
    %c0_i32 = arith.constant 0 : i32
    %c0_i32_0 = arith.constant 0 : i32
    %c0_i32_1 = arith.constant 0 : i32
    return %c0_i32, %c0_i32_0 : i32, i32
  }
  func.func @transform_1(%arg0: i32) -> (i32, i32) {
    %c0_i32 = arith.constant 0 : i32
    %c0_i32_0 = arith.constant 0 : i32
    %c0_i32_1 = arith.constant 0 : i32
    return %c0_i32, %c0_i32_0 : i32, i32
  }
  func.func @transform_2(%arg0: i32) -> (i32, i32) {
    %c0_i32 = arith.constant 0 : i32
    %c0_i32_0 = arith.constant 0 : i32
    %c0_i32_1 = arith.constant 0 : i32
    return %c0_i32, %c0_i32_0 : i32, i32
  }
  func.func @transform_3(%arg0: i32) -> (i32, i32) {
    %c0_i32 = arith.constant 0 : i32
    %c0_i32_0 = arith.constant 0 : i32
    %c0_i32_1 = arith.constant 0 : i32
    return %c0_i32, %c0_i32_0 : i32, i32
  }
  func.func @transform_4(%arg0: i32) -> (i32, i32) {
    %c0_i32 = arith.constant 0 : i32
    %c0_i32_0 = arith.constant 0 : i32
    %c0_i32_1 = arith.constant 0 : i32
    return %c0_i32, %c0_i32_0 : i32, i32
  }
  func.func @transform_5(%arg0: i32) -> (i32, i32) {
    %c0_i32 = arith.constant 0 : i32
    %c0_i32_0 = arith.constant 0 : i32
    %c0_i32_1 = arith.constant 0 : i32
    return %c0_i32, %c0_i32_0 : i32, i32
  }
  func.func @transform_6(%arg0: i32) -> (i32, i32) {
    %c0_i32 = arith.constant 0 : i32
    %c0_i32_0 = arith.constant 0 : i32
    %c0_i32_1 = arith.constant 0 : i32
    return %c0_i32, %c0_i32_0 : i32, i32
  }
  func.func @transform_7(%arg0: i32) -> (i32, i32) {
    %c0_i32 = arith.constant 0 : i32
    %c0_i32_0 = arith.constant 0 : i32
    %c0_i32_1 = arith.constant 0 : i32
    return %c0_i32, %c0_i32_0 : i32, i32
  }
  func.func @transform_8(%arg0: i32) -> (i32, i32) {
    %c0_i32 = arith.constant 0 : i32
    %c0_i32_0 = arith.constant 0 : i32
    %c0_i32_1 = arith.constant 0 : i32
    return %c0_i32, %c0_i32_0 : i32, i32
  }
}

</mosaic_0001>

<llo_original>
// kernel: tpu_custom_call.1
$region0: #{tpu_custom_call.1}
  #allocation0 [shape = 'u32[]', space=smem, size = 0x4, offset = 0x4, fixed_abs, tag = 'smem constant byte address 0x4 - core index']
  #allocation1 [shape = 'u32[144,128]{1,0:T(1,128)}', space=vmem, size = 0x12000, scoped, tag = 'internal scratch']
  %s0 = inlined_call_operand.vmem [shape: f32[128,8], index: 0, kind: input, shape index: {}]
  %s1 = inlined_call_operand.vmem [shape: f32[8,32], index: 1, kind: input, shape index: {}]
  %s2 = inlined_call_operand.vmem [shape: f32[32,64], index: 2, kind: input, shape index: {}]
  %s3 = inlined_call_operand.vmem [shape: f32[64,32], index: 3, kind: input, shape index: {}]
  %s4 = inlined_call_operand.vmem [shape: f32[1,32], index: 4, kind: input, shape index: {}]
  %s5 = inlined_call_operand.vmem [shape: f32[1,64], index: 5, kind: input, shape index: {}]
  %s6 = inlined_call_operand.vmem [shape: f32[1,32], index: 6, kind: input, shape index: {}]
  %s7 = inlined_call_operand.vmem [shape: f32[128,32], index: 7, kind: output, shape index: {0}]
  %s8 = inlined_call_operand.hbm [shape: f32[1,1], index: 8, kind: output, shape index: {1}]
  %9 = xla_tuple %s7, %s8
  %s10 = sld [smem:[#allocation0]]
  $region46: #{tpu_custom_call.1} parent=0
    _
  %s12 = ssub.s32 1, %s10
  %s13 = scalar_select 0, %s12, %s10
  $region1: #{tpu_custom_call.1} parent=0
    #allocation2 [shape = 'u8[512]{0}', space=vmem, size = 0x400, scoped, tag = 'output window, operand 1, single buffered']
    #allocation3 [shape = 's32[1]{0}', space=sflag, size = 0x4, scoped, tag = 'scoped memory for tpu_custom_call.1']
    %14 = vsyncpa [#allocation3], 0
    // Predicated region
    $region2: #{tpu_custom_call.1} parent=1 // pred_check
      _
    $region3: #{tpu_custom_call.1} parent=1 // pred_check_branch
      %16 = sbr.rel (0) target = $region5
    $region4: #{tpu_custom_call.1} parent=1 // pred_region
      _
    $region5: #{tpu_custom_call.1} parent=1 // pred_fallthru
      _
    // Predicated region
    $region6: #{tpu_custom_call.1} parent=1 // pred_check
      _
    $region7: #{tpu_custom_call.1} parent=1 // pred_check_branch
      %18 = sbr.rel (0) target = $region9
    $region8: #{tpu_custom_call.1} parent=1 // pred_region
      _
    $region9: #{tpu_custom_call.1} parent=1 // pred_fallthru
      _
    // Predicated region
    $region10: #{tpu_custom_call.1} parent=1 // pred_check
      _
    $region11: #{tpu_custom_call.1} parent=1 // pred_check_branch
      %20 = sbr.rel (0) target = $region13
    $region12: #{tpu_custom_call.1} parent=1 // pred_region
      _
    $region13: #{tpu_custom_call.1} parent=1 // pred_fallthru
      _
    // Predicated region
    $region14: #{tpu_custom_call.1} parent=1 // pred_check
      _
    $region15: #{tpu_custom_call.1} parent=1 // pred_check_branch
      %22 = sbr.rel (0) target = $region17
    $region16: #{tpu_custom_call.1} parent=1 // pred_region
      _
    $region17: #{tpu_custom_call.1} parent=1 // pred_fallthru
      _
    // Predicated region
    $region18: #{tpu_custom_call.1} parent=1 // pred_check
      _
    $region19: #{tpu_custom_call.1} parent=1 // pred_check_branch
      %24 = sbr.rel (0) target = $region21
    $region20: #{tpu_custom_call.1} parent=1 // pred_region
      _
    $region21: #{tpu_custom_call.1} parent=1 // pred_fallthru
      _
    // Predicated region
    $region22: #{tpu_custom_call.1} parent=1 // pred_check
      _
    $region23: #{tpu_custom_call.1} parent=1 // pred_check_branch
      %26 = sbr.rel (0) target = $region25
    $region24: #{tpu_custom_call.1} parent=1 // pred_region
      _
    $region25: #{tpu_custom_call.1} parent=1 // pred_fallthru
      _
    // Predicated region
    $region26: #{tpu_custom_call.1} parent=1 // pred_check
      _
    $region27: #{tpu_custom_call.1} parent=1 // pred_check_branch
      %28 = sbr.rel (0) target = $region29
    $region28: #{tpu_custom_call.1} parent=1 // pred_region
      _
    $region29: #{tpu_custom_call.1} parent=1 // pred_fallthru
      _
    %v30 = vld [vmem:[%s0] sm:$0xff]
    %v31 = vld [vmem:[%s0 + $0x8] sm:$0xff]
    %v32 = vld [vmem:[%s0 + $0x10] sm:$0xff]
    %v33 = vld [vmem:[%s0 + $0x18] sm:$0xff]
    %v34 = vld [vmem:[%s0 + $0x20] sm:$0xff]
    %v35 = vld [vmem:[%s0 + $0x28] sm:$0xff]
    %v36 = vld [vmem:[%s0 + $0x30] sm:$0xff]
    %v37 = vld [vmem:[%s0 + $0x38] sm:$0xff]
    %v38 = vld [vmem:[%s0 + $0x40] sm:$0xff]
    %v39 = vld [vmem:[%s0 + $0x48] sm:$0xff]
    %v40 = vld [vmem:[%s0 + $0x50] sm:$0xff]
    %v41 = vld [vmem:[%s0 + $0x58] sm:$0xff]
    %v42 = vld [vmem:[%s0 + $0x60] sm:$0xff]
    %v43 = vld [vmem:[%s0 + $0x68] sm:$0xff]
    %v44 = vld [vmem:[%s0 + $0x70] sm:$0xff]
    %v45 = vld [vmem:[%s0 + $0x78] sm:$0xff]
    %v46 = vpack.c.bf16 %v31, %v30
    %v47 = vpack.c.bf16 %v33, %v32
    %v48 = vpack.c.bf16 %v35, %v34
    %v49 = vpack.c.bf16 %v37, %v36
    %v50 = vpack.c.bf16 %v39, %v38
    %v51 = vpack.c.bf16 %v41, %v40
    %v52 = vpack.c.bf16 %v43, %v42
    %v53 = vpack.c.bf16 %v45, %v44
    %v54 = vld [vmem:[%s1] sm:$0xff]
    %v55 = vpack.c.bf16 %v54, %v54
    %v56 = vld [vmem:[%s4] sm:$0x1]
    %v58 = vlaneseq
    %v59 = vshrl.u32 %v58, 7
    %v60 = vsub.s32 0, %v59
    %v61 = vrot.slane %v56, %v60
    %vm63 = vcmask 64512
    %v65 = vsel %vm63, %v46, 0
    %v68 = vsel %vm63, %v47, 0
    %v71 = vsel %vm63, %v48, 0
    %v74 = vsel %vm63, %v49, 0
    %v77 = vsel %vm63, %v50, 0
    %v80 = vsel %vm63, %v51, 0
    %v83 = vsel %vm63, %v52, 0
    %v86 = vsel %vm63, %v53, 0
    %vm88 = vcmask 1043456
    %v90 = vsel %vm88, %v55, 0
    %92 = vmatprep.subr.bf16.mxu0 0
    %93 = vmatpush1.bf16.msra.mxu0 0
    %94 = vmatprep.subr.bf16.mxu0 0
    %95 = vmatpush1.bf16.msra.mxu0 0
    %96 = vmatprep.subr.bf16.mxu0 0
    %97 = vmatpush1.bf16.msra.mxu0 0
    %98 = vmatprep.subr.bf16.mxu0 0
    %99 = vmatpush1.bf16.msra.mxu0 0
    %100 = vmatprep.subr.bf16.mxu0 0
    %101 = vmatpush1.bf16.msra.mxu0 0
    %102 = vmatprep.subr.bf16.mxu0 0
    %103 = vmatpush1.bf16.msra.mxu0 0
    %104 = vmatprep.subr.bf16.mxu0 0
    %105 = vmatpush1.bf16.msra.mxu0 0
    %106 = vmatprep.subr.bf16.mxu0 0
    %107 = vmatpush1.bf16.msra.mxu0 %v90
    %108 = vmatprep.subr.bf16.mxu0 0
    %109 = vmatpush2.bf16.msra.mxu0 0
    %110 = vmatprep.subr.bf16.mxu0 0
    %111 = vmatpush2.bf16.msra.mxu0 0
    %112 = vmatprep.subr.bf16.mxu0 0
    %113 = vmatpush2.bf16.msra.mxu0 0
    %114 = vmatprep.subr.bf16.mxu0 0
    %115 = vmatpush2.bf16.msra.mxu0 0
    %116 = vmatprep.subr.bf16.mxu0 0
    %117 = vmatpush2.bf16.msra.mxu0 0
    %118 = vmatprep.subr.bf16.mxu0 0
    %119 = vmatpush2.bf16.msra.mxu0 0
    %120 = vmatprep.subr.bf16.mxu0 0
    %121 = vmatpush2.bf16.msra.mxu0 0
    %122 = vmatprep.subr.bf16.mxu0 0
    %123 = vmatpush2.bf16.msra.mxu0 0
    %124 = vmatprep.mubr.bf16.mxu0 0
    %125 = vmatmul.mubr.bf16.gmra.mxu0 %v65
    %v126 = vpop.f32.mrf.mxu0
    %v127 = vadd.f32 %v61, %v126
    %v128 = vpop.f32.mrf.mxu0
    %v129 = vpop.f32.mrf.mxu0
    %v130 = vadd.f32 %v61, %v129
    %v131 = vpop.f32.mrf.mxu0
    %132 = vmatprep.mubr.bf16.mxu0 0
    %133 = vmatmul.mubr.bf16.gmra.mxu0 %v68
    %v134 = vpop.f32.mrf.mxu0
    %v135 = vadd.f32 %v61, %v134
    %v136 = vpop.f32.mrf.mxu0
    %v137 = vpop.f32.mrf.mxu0
    %v138 = vadd.f32 %v61, %v137
    %v139 = vpop.f32.mrf.mxu0
    %140 = vmatprep.mubr.bf16.mxu0 0
    %141 = vmatmul.mubr.bf16.gmra.mxu0 %v71
    %v142 = vpop.f32.mrf.mxu0
    %v143 = vadd.f32 %v61, %v142
    %v144 = vpop.f32.mrf.mxu0
    %v145 = vpop.f32.mrf.mxu0
    %v146 = vadd.f32 %v61, %v145
    %v147 = vpop.f32.mrf.mxu0
    %148 = vmatprep.mubr.bf16.mxu0 0
    %149 = vmatmul.mubr.bf16.gmra.mxu0 %v74
    %v150 = vpop.f32.mrf.mxu0
    %v151 = vadd.f32 %v61, %v150
    %v152 = vpop.f32.mrf.mxu0
    %v153 = vpop.f32.mrf.mxu0
    %v154 = vadd.f32 %v61, %v153
    %v155 = vpop.f32.mrf.mxu0
    %156 = vmatprep.mubr.bf16.mxu0 0
    %157 = vmatmul.mubr.bf16.gmra.mxu0 %v77
    %v158 = vpop.f32.mrf.mxu0
    %v159 = vadd.f32 %v61, %v158
    %v160 = vpop.f32.mrf.mxu0
    %v161 = vpop.f32.mrf.mxu0
    %v162 = vadd.f32 %v61, %v161
    %v163 = vpop.f32.mrf.mxu0
    %164 = vmatprep.mubr.bf16.mxu0 0
    %165 = vmatmul.mubr.bf16.gmra.mxu0 %v80
    %v166 = vpop.f32.mrf.mxu0
    %v167 = vadd.f32 %v61, %v166
    %v168 = vpop.f32.mrf.mxu0
    %v169 = vpop.f32.mrf.mxu0
    %v170 = vadd.f32 %v61, %v169
    %v171 = vpop.f32.mrf.mxu0
    %172 = vmatprep.mubr.bf16.mxu0 0
    %173 = vmatmul.mubr.bf16.gmra.mxu0 %v83
    %v174 = vpop.f32.mrf.mxu0
    %v175 = vadd.f32 %v61, %v174
    %v176 = vpop.f32.mrf.mxu0
    %v177 = vpop.f32.mrf.mxu0
    %v178 = vadd.f32 %v61, %v177
    %v179 = vpop.f32.mrf.mxu0
    %180 = vmatprep.mubr.bf16.mxu0 0
    %181 = vmatmul.mubr.bf16.gmra.mxu0 %v86
    %v182 = vpop.f32.mrf.mxu0
    %v183 = vadd.f32 %v61, %v182
    %v184 = vpop.f32.mrf.mxu0
    %v185 = vpop.f32.mrf.mxu0
    %v186 = vadd.f32 %v61, %v185
    %v187 = vpop.f32.mrf.mxu0
    %188 = vdwg.mxu0
    %v189 = vmul.f32 %v127, %v127
    %v190 = vmul.f32 %v130, %v130
    %v191 = vmul.f32 %v135, %v135
    %v192 = vmul.f32 %v138, %v138
    %v193 = vmul.f32 %v143, %v143
    %v194 = vmul.f32 %v146, %v146
    %v195 = vmul.f32 %v151, %v151
    %v196 = vmul.f32 %v154, %v154
    %v197 = vmul.f32 %v159, %v159
    %v198 = vmul.f32 %v162, %v162
    %v199 = vmul.f32 %v167, %v167
    %v200 = vmul.f32 %v170, %v170
    %v201 = vmul.f32 %v175, %v175
    %v202 = vmul.f32 %v178, %v178
    %v203 = vmul.f32 %v183, %v183
    %v204 = vmul.f32 %v186, %v186
    %v205 = vmul.f32 %v127, %v189
    %v206 = vmul.f32 %v130, %v190
    %v207 = vmul.f32 %v135, %v191
    %v208 = vmul.f32 %v138, %v192
    %v209 = vmul.f32 %v143, %v193
    %v210 = vmul.f32 %v146, %v194
    %v211 = vmul.f32 %v151, %v195
    %v212 = vmul.f32 %v154, %v196
    %v213 = vmul.f32 %v159, %v197
    %v214 = vmul.f32 %v162, %v198
    %v215 = vmul.f32 %v167, %v199
    %v216 = vmul.f32 %v170, %v200
    %v217 = vmul.f32 %v175, %v201
    %v218 = vmul.f32 %v178, %v202
    %v219 = vmul.f32 %v183, %v203
    %v220 = vmul.f32 %v186, %v204
    %v221 = vmul.f32 %v205, 0.044715
    %v222 = vmul.f32 %v206, 0.044715
    %v223 = vmul.f32 %v207, 0.044715
    %v224 = vmul.f32 %v208, 0.044715
    %v225 = vmul.f32 %v209, 0.044715
    %v226 = vmul.f32 %v210, 0.044715
    %v227 = vmul.f32 %v211, 0.044715
    %v228 = vmul.f32 %v212, 0.044715
    %v229 = vmul.f32 %v213, 0.044715
    %v230 = vmul.f32 %v214, 0.044715
    %v231 = vmul.f32 %v215, 0.044715
    %v232 = vmul.f32 %v216, 0.044715
    %v233 = vmul.f32 %v217, 0.044715
    %v234 = vmul.f32 %v218, 0.044715
    %v235 = vmul.f32 %v219, 0.044715
    %v236 = vmul.f32 %v220, 0.044715
    %v237 = vadd.f32 %v127, %v221
    %v238 = vadd.f32 %v130, %v222
    %v239 = vadd.f32 %v135, %v223
    %v240 = vadd.f32 %v138, %v224
    %v241 = vadd.f32 %v143, %v225
    %v242 = vadd.f32 %v146, %v226
    %v243 = vadd.f32 %v151, %v227
    %v244 = vadd.f32 %v154, %v228
    %v245 = vadd.f32 %v159, %v229
    %v246 = vadd.f32 %v162, %v230
    %v247 = vadd.f32 %v167, %v231
    %v248 = vadd.f32 %v170, %v232
    %v249 = vadd.f32 %v175, %v233
    %v250 = vadd.f32 %v178, %v234
    %v251 = vadd.f32 %v183, %v235
    %v252 = vadd.f32 %v186, %v236
    %v253 = vmul.f32 %v237, 0.7978846
    %v254 = vmul.f32 %v238, 0.7978846
    %v255 = vmul.f32 %v239, 0.7978846
    %v256 = vmul.f32 %v240, 0.7978846
    %v257 = vmul.f32 %v241, 0.7978846
    %v258 = vmul.f32 %v242, 0.7978846
    %v259 = vmul.f32 %v243, 0.7978846
    %v260 = vmul.f32 %v244, 0.7978846
    %v261 = vmul.f32 %v245, 0.7978846
    %v262 = vmul.f32 %v246, 0.7978846
    %v263 = vmul.f32 %v247, 0.7978846
    %v264 = vmul.f32 %v248, 0.7978846
    %v265 = vmul.f32 %v249, 0.7978846
    %v266 = vmul.f32 %v250, 0.7978846
    %v267 = vmul.f32 %v251, 0.7978846
    %v268 = vmul.f32 %v252, 0.7978846
    %v269 = vtanh.pop %v253
    %v270 = vtanh.pop %v254
    %v271 = vtanh.pop %v255
    %v272 = vtanh.pop %v256
    %v273 = vtanh.pop %v257
    %v274 = vtanh.pop %v258
    %v275 = vtanh.pop %v259
    %v276 = vtanh.pop %v260
    %v277 = vtanh.pop %v261
    %v278 = vtanh.pop %v262
    %v279 = vtanh.pop %v263
    %v280 = vtanh.pop %v264
    %v281 = vtanh.pop %v265
    %v282 = vtanh.pop %v266
    %v283 = vtanh.pop %v267
    %v284 = vtanh.pop %v268
    %v285 = vadd.f32 %v269, 1.0
    %v286 = vadd.f32 %v270, 1.0
    %v287 = vadd.f32 %v271, 1.0
    %v288 = vadd.f32 %v272, 1.0
    %v289 = vadd.f32 %v273, 1.0
    %v290 = vadd.f32 %v274, 1.0
    %v291 = vadd.f32 %v275, 1.0
    %v292 = vadd.f32 %v276, 1.0
    %v293 = vadd.f32 %v277, 1.0
    %v294 = vadd.f32 %v278, 1.0
    %v295 = vadd.f32 %v279, 1.0
    %v296 = vadd.f32 %v280, 1.0
    %v297 = vadd.f32 %v281, 1.0
    %v298 = vadd.f32 %v282, 1.0
    %v299 = vadd.f32 %v283, 1.0
    %v300 = vadd.f32 %v284, 1.0
    %v301 = vmul.f32 %v285, 0.5
    %v302 = vmul.f32 %v286, 0.5
    %v303 = vmul.f32 %v287, 0.5
    %v304 = vmul.f32 %v288, 0.5
    %v305 = vmul.f32 %v289, 0.5
    %v306 = vmul.f32 %v290, 0.5
    %v307 = vmul.f32 %v291, 0.5
    %v308 = vmul.f32 %v292, 0.5
    %v309 = vmul.f32 %v293, 0.5
    %v310 = vmul.f32 %v294, 0.5
    %v311 = vmul.f32 %v295, 0.5
    %v312 = vmul.f32 %v296, 0.5
    %v313 = vmul.f32 %v297, 0.5
    %v314 = vmul.f32 %v298, 0.5
    %v315 = vmul.f32 %v299, 0.5
    %v316 = vmul.f32 %v300, 0.5
    %v317 = vmul.f32 %v127, %v301
    %v318 = vmul.f32 %v130, %v302
    %v319 = vmul.f32 %v135, %v303
    %v320 = vmul.f32 %v138, %v304
    %v321 = vmul.f32 %v143, %v305
    %v322 = vmul.f32 %v146, %v306
    %v323 = vmul.f32 %v151, %v307
    %v324 = vmul.f32 %v154, %v308
    %v325 = vmul.f32 %v159, %v309
    %v326 = vmul.f32 %v162, %v310
    %v327 = vmul.f32 %v167, %v311
    %v328 = vmul.f32 %v170, %v312
    %v329 = vmul.f32 %v175, %v313
    %v330 = vmul.f32 %v178, %v314
    %v331 = vmul.f32 %v183, %v315
    %v332 = vmul.f32 %v186, %v316
    %v333 = vpack.c.bf16 %v318, %v317
    %v334 = vpack.c.bf16 %v320, %v319
    %v335 = vpack.c.bf16 %v322, %v321
    %v336 = vpack.c.bf16 %v324, %v323
    %v337 = vpack.c.bf16 %v326, %v325
    %v338 = vpack.c.bf16 %v328, %v327
    %v339 = vpack.c.bf16 %v330, %v329
    %v340 = vpack.c.bf16 %v332, %v331
    %v341 = vld [vmem:[%s2] sm:$0xff]
    %v342 = vld [vmem:[%s2 + $0x8] sm:$0xff]
    %v343 = vld [vmem:[%s2 + $0x10] sm:$0xff]
    %v344 = vld [vmem:[%s2 + $0x18] sm:$0xff]
    %v345 = vpack.c.bf16 %v342, %v341
    %v346 = vpack.c.bf16 %v344, %v343
    %v347 = vld [vmem:[%s5] sm:$0x1]
    %v349 = vlaneseq
    %v350 = vshrl.u32 %v349, 7
    %v351 = vsub.s32 0, %v350
    %v352 = vrot.slane %v347, %v351
    %vm354 = vcmask 261120
    %v356 = vsel %vm354, %v333, 0
    %v359 = vsel %vm354, %v334, 0
    %v362 = vsel %vm354, %v335, 0
    %v365 = vsel %vm354, %v336, 0
    %v368 = vsel %vm354, %v337, 0
    %v371 = vsel %vm354, %v338, 0
    %v374 = vsel %vm354, %v339, 0
    %v377 = vsel %vm354, %v340, 0
    %379 = vmatprep.subr.bf16.mxu0 0
    %380 = vmatpush1.bf16.msra.mxu0 0
    %381 = vmatprep.subr.bf16.mxu0 0
    %382 = vmatpush1.bf16.msra.mxu0 0
    %383 = vmatprep.subr.bf16.mxu0 0
    %384 = vmatpush1.bf16.msra.mxu0 0
    %385 = vmatprep.subr.bf16.mxu0 0
    %386 = vmatpush1.bf16.msra.mxu0 0
    %387 = vmatprep.subr.bf16.mxu0 0
    %388 = vmatpush1.bf16.msra.mxu0 0
    %389 = vmatprep.subr.bf16.mxu0 0
    %390 = vmatpush1.bf16.msra.mxu0 0
    %391 = vmatprep.subr.bf16.mxu0 0
    %392 = vmatpush1.bf16.msra.mxu0 %v346
    %393 = vmatprep.subr.bf16.mxu0 0
    %394 = vmatpush1.bf16.msra.mxu0 %v345
    %395 = vmatprep.subr.bf16.mxu0 0
    %396 = vmatpush2.bf16.msra.mxu0 0
    %397 = vmatprep.subr.bf16.mxu0 0
    %398 = vmatpush2.bf16.msra.mxu0 0
    %399 = vmatprep.subr.bf16.mxu0 0
    %400 = vmatpush2.bf16.msra.mxu0 0
    %401 = vmatprep.subr.bf16.mxu0 0
    %402 = vmatpush2.bf16.msra.mxu0 0
    %403 = vmatprep.subr.bf16.mxu0 0
    %404 = vmatpush2.bf16.msra.mxu0 0
    %405 = vmatprep.subr.bf16.mxu0 0
    %406 = vmatpush2.bf16.msra.mxu0 0
    %407 = vmatprep.subr.bf16.mxu0 0
    %408 = vmatpush2.bf16.msra.mxu0 0
    %409 = vmatprep.subr.bf16.mxu0 0
    %410 = vmatpush2.bf16.msra.mxu0 0
    %411 = vmatprep.mubr.bf16.mxu0 0
    %412 = vmatmul.mubr.bf16.gmra.mxu0 %v356
    %v413 = vpop.f32.mrf.mxu0
    %v414 = vadd.f32 %v352, %v413
    %v415 = vpop.f32.mrf.mxu0
    %v416 = vpop.f32.mrf.mxu0
    %v417 = vadd.f32 %v352, %v416
    %v418 = vpop.f32.mrf.mxu0
    %419 = vmatprep.mubr.bf16.mxu0 0
    %420 = vmatmul.mubr.bf16.gmra.mxu0 %v359
    %v421 = vpop.f32.mrf.mxu0
    %v422 = vadd.f32 %v352, %v421
    %v423 = vpop.f32.mrf.mxu0
    %v424 = vpop.f32.mrf.mxu0
    %v425 = vadd.f32 %v352, %v424
    %v426 = vpop.f32.mrf.mxu0
    %427 = vmatprep.mubr.bf16.mxu0 0
    %428 = vmatmul.mubr.bf16.gmra.mxu0 %v362
    %v429 = vpop.f32.mrf.mxu0
    %v430 = vadd.f32 %v352, %v429
    %v431 = vpop.f32.mrf.mxu0
    %v432 = vpop.f32.mrf.mxu0
    %v433 = vadd.f32 %v352, %v432
    %v434 = vpop.f32.mrf.mxu0
    %435 = vmatprep.mubr.bf16.mxu0 0
    %436 = vmatmul.mubr.bf16.gmra.mxu0 %v365
    %v437 = vpop.f32.mrf.mxu0
    %v438 = vadd.f32 %v352, %v437
    %v439 = vpop.f32.mrf.mxu0
    %v440 = vpop.f32.mrf.mxu0
    %v441 = vadd.f32 %v352, %v440
    %v442 = vpop.f32.mrf.mxu0
    %443 = vmatprep.mubr.bf16.mxu0 0
    %444 = vmatmul.mubr.bf16.gmra.mxu0 %v368
    %v445 = vpop.f32.mrf.mxu0
    %v446 = vadd.f32 %v352, %v445
    %v447 = vpop.f32.mrf.mxu0
    %v448 = vpop.f32.mrf.mxu0
    %v449 = vadd.f32 %v352, %v448
    %v450 = vpop.f32.mrf.mxu0
    %451 = vmatprep.mubr.bf16.mxu0 0
    %452 = vmatmul.mubr.bf16.gmra.mxu0 %v371
    %v453 = vpop.f32.mrf.mxu0
    %v454 = vadd.f32 %v352, %v453
    %v455 = vpop.f32.mrf.mxu0
    %v456 = vpop.f32.mrf.mxu0
    %v457 = vadd.f32 %v352, %v456
    %v458 = vpop.f32.mrf.mxu0
    %459 = vmatprep.mubr.bf16.mxu0 0
    %460 = vmatmul.mubr.bf16.gmra.mxu0 %v374
    %v461 = vpop.f32.mrf.mxu0
    %v462 = vadd.f32 %v352, %v461
    %v463 = vpop.f32.mrf.mxu0
    %v464 = vpop.f32.mrf.mxu0
    %v465 = vadd.f32 %v352, %v464
    %v466 = vpop.f32.mrf.mxu0
    %467 = vmatprep.mubr.bf16.mxu0 0
    %468 = vmatmul.mubr.bf16.gmra.mxu0 %v377
    %v469 = vpop.f32.mrf.mxu0
    %v470 = vadd.f32 %v352, %v469
    %v471 = vpop.f32.mrf.mxu0
    %v472 = vpop.f32.mrf.mxu0
    %v473 = vadd.f32 %v352, %v472
    %v474 = vpop.f32.mrf.mxu0
    %475 = vdwg.mxu0
    %v476 = vmul.f32 %v414, %v414
    %v477 = vmul.f32 %v417, %v417
    %v478 = vmul.f32 %v422, %v422
    %v479 = vmul.f32 %v425, %v425
    %v480 = vmul.f32 %v430, %v430
    %v481 = vmul.f32 %v433, %v433
    %v482 = vmul.f32 %v438, %v438
    %v483 = vmul.f32 %v441, %v441
    %v484 = vmul.f32 %v446, %v446
    %v485 = vmul.f32 %v449, %v449
    %v486 = vmul.f32 %v454, %v454
    %v487 = vmul.f32 %v457, %v457
    %v488 = vmul.f32 %v462, %v462
    %v489 = vmul.f32 %v465, %v465
    %v490 = vmul.f32 %v470, %v470
    %v491 = vmul.f32 %v473, %v473
    %v492 = vmul.f32 %v414, %v476
    %v493 = vmul.f32 %v417, %v477
    %v494 = vmul.f32 %v422, %v478
    %v495 = vmul.f32 %v425, %v479
    %v496 = vmul.f32 %v430, %v480
    %v497 = vmul.f32 %v433, %v481
    %v498 = vmul.f32 %v438, %v482
    %v499 = vmul.f32 %v441, %v483
    %v500 = vmul.f32 %v446, %v484
    %v501 = vmul.f32 %v449, %v485
    %v502 = vmul.f32 %v454, %v486
    %v503 = vmul.f32 %v457, %v487
    %v504 = vmul.f32 %v462, %v488
    %v505 = vmul.f32 %v465, %v489
    %v506 = vmul.f32 %v470, %v490
    %v507 = vmul.f32 %v473, %v491
    %v508 = vmul.f32 %v492, 0.044715
    %v509 = vmul.f32 %v493, 0.044715
    %v510 = vmul.f32 %v494, 0.044715
    %v511 = vmul.f32 %v495, 0.044715
    %v512 = vmul.f32 %v496, 0.044715
    %v513 = vmul.f32 %v497, 0.044715
    %v514 = vmul.f32 %v498, 0.044715
    %v515 = vmul.f32 %v499, 0.044715
    %v516 = vmul.f32 %v500, 0.044715
    %v517 = vmul.f32 %v501, 0.044715
    %v518 = vmul.f32 %v502, 0.044715
    %v519 = vmul.f32 %v503, 0.044715
    %v520 = vmul.f32 %v504, 0.044715
    %v521 = vmul.f32 %v505, 0.044715
    %v522 = vmul.f32 %v506, 0.044715
    %v523 = vmul.f32 %v507, 0.044715
    %v524 = vadd.f32 %v414, %v508
    %v525 = vadd.f32 %v417, %v509
    %v526 = vadd.f32 %v422, %v510
    %v527 = vadd.f32 %v425, %v511
    %v528 = vadd.f32 %v430, %v512
    %v529 = vadd.f32 %v433, %v513
    %v530 = vadd.f32 %v438, %v514
    %v531 = vadd.f32 %v441, %v515
    %v532 = vadd.f32 %v446, %v516
    %v533 = vadd.f32 %v449, %v517
    %v534 = vadd.f32 %v454, %v518
    %v535 = vadd.f32 %v457, %v519
    %v536 = vadd.f32 %v462, %v520
    %v537 = vadd.f32 %v465, %v521
    %v538 = vadd.f32 %v470, %v522
    %v539 = vadd.f32 %v473, %v523
    %v540 = vmul.f32 %v524, 0.7978846
    %v541 = vmul.f32 %v525, 0.7978846
    %v542 = vmul.f32 %v526, 0.7978846
    %v543 = vmul.f32 %v527, 0.7978846
    %v544 = vmul.f32 %v528, 0.7978846
    %v545 = vmul.f32 %v529, 0.7978846
    %v546 = vmul.f32 %v530, 0.7978846
    %v547 = vmul.f32 %v531, 0.7978846
    %v548 = vmul.f32 %v532, 0.7978846
    %v549 = vmul.f32 %v533, 0.7978846
    %v550 = vmul.f32 %v534, 0.7978846
    %v551 = vmul.f32 %v535, 0.7978846
    %v552 = vmul.f32 %v536, 0.7978846
    %v553 = vmul.f32 %v537, 0.7978846
    %v554 = vmul.f32 %v538, 0.7978846
    %v555 = vmul.f32 %v539, 0.7978846
    %v556 = vtanh.pop %v540
    %v557 = vtanh.pop %v541
    %v558 = vtanh.pop %v542
    %v559 = vtanh.pop %v543
    %v560 = vtanh.pop %v544
    %v561 = vtanh.pop %v545
    %v562 = vtanh.pop %v546
    %v563 = vtanh.pop %v547
    %v564 = vtanh.pop %v548
    %v565 = vtanh.pop %v549
    %v566 = vtanh.pop %v550
    %v567 = vtanh.pop %v551
    %v568 = vtanh.pop %v552
    %v569 = vtanh.pop %v553
    %v570 = vtanh.pop %v554
    %v571 = vtanh.pop %v555
    %v572 = vadd.f32 %v556, 1.0
    %v573 = vadd.f32 %v557, 1.0
    %v574 = vadd.f32 %v558, 1.0
    %v575 = vadd.f32 %v559, 1.0
    %v576 = vadd.f32 %v560, 1.0
    %v577 = vadd.f32 %v561, 1.0
    %v578 = vadd.f32 %v562, 1.0
    %v579 = vadd.f32 %v563, 1.0
    %v580 = vadd.f32 %v564, 1.0
    %v581 = vadd.f32 %v565, 1.0
    %v582 = vadd.f32 %v566, 1.0
    %v583 = vadd.f32 %v567, 1.0
    %v584 = vadd.f32 %v568, 1.0
    %v585 = vadd.f32 %v569, 1.0
    %v586 = vadd.f32 %v570, 1.0
    %v587 = vadd.f32 %v571, 1.0
    %v588 = vmul.f32 %v572, 0.5
    %v589 = vmul.f32 %v573, 0.5
    %v590 = vmul.f32 %v574, 0.5
    %v591 = vmul.f32 %v575, 0.5
    %v592 = vmul.f32 %v576, 0.5
    %v593 = vmul.f32 %v577, 0.5
    %v594 = vmul.f32 %v578, 0.5
    %v595 = vmul.f32 %v579, 0.5
    %v596 = vmul.f32 %v580, 0.5
    %v597 = vmul.f32 %v581, 0.5
    %v598 = vmul.f32 %v582, 0.5
    %v599 = vmul.f32 %v583, 0.5
    %v600 = vmul.f32 %v584, 0.5
    %v601 = vmul.f32 %v585, 0.5
    %v602 = vmul.f32 %v586, 0.5
    %v603 = vmul.f32 %v587, 0.5
    %v604 = vmul.f32 %v414, %v588
    %v605 = vmul.f32 %v417, %v589
    %v606 = vmul.f32 %v422, %v590
    %v607 = vmul.f32 %v425, %v591
    %v608 = vmul.f32 %v430, %v592
    %v609 = vmul.f32 %v433, %v593
    %v610 = vmul.f32 %v438, %v594
    %v611 = vmul.f32 %v441, %v595
    %v612 = vmul.f32 %v446, %v596
    %v613 = vmul.f32 %v449, %v597
    %v614 = vmul.f32 %v454, %v598
    %v615 = vmul.f32 %v457, %v599
    %v616 = vmul.f32 %v462, %v600
    %v617 = vmul.f32 %v465, %v601
    %v618 = vmul.f32 %v470, %v602
    %v619 = vmul.f32 %v473, %v603
    %v620 = vpack.c.bf16 %v605, %v604
    %v621 = vpack.c.bf16 %v607, %v606
    %v622 = vpack.c.bf16 %v609, %v608
    %v623 = vpack.c.bf16 %v611, %v610
    %v624 = vpack.c.bf16 %v613, %v612
    %v625 = vpack.c.bf16 %v615, %v614
    %v626 = vpack.c.bf16 %v617, %v616
    %v627 = vpack.c.bf16 %v619, %v618
    %v628 = vld [vmem:[%s3] sm:$0xff]
    %v629 = vld [vmem:[%s3 + $0x8] sm:$0xff]
    %v630 = vld [vmem:[%s3 + $0x10] sm:$0xff]
    %v631 = vld [vmem:[%s3 + $0x18] sm:$0xff]
    %v632 = vld [vmem:[%s3 + $0x20] sm:$0xff]
    %v633 = vld [vmem:[%s3 + $0x28] sm:$0xff]
    %v634 = vld [vmem:[%s3 + $0x30] sm:$0xff]
    %v635 = vld [vmem:[%s3 + $0x38] sm:$0xff]
    %v636 = vpack.c.bf16 %v629, %v628
    %v637 = vpack.c.bf16 %v631, %v630
    %v638 = vpack.c.bf16 %v633, %v632
    %v639 = vpack.c.bf16 %v635, %v634
    %v640 = vld [vmem:[%s6] sm:$0x1]
    %v642 = vlaneseq
    %v643 = vshrl.u32 %v642, 7
    %v644 = vsub.s32 0, %v643
    %v645 = vrot.slane %v640, %v644
    %vm647 = vcmask 523264
    %v649 = vsel %vm647, %v620, 0
    %v652 = vsel %vm647, %v621, 0
    %v655 = vsel %vm647, %v622, 0
    %v658 = vsel %vm647, %v623, 0
    %v661 = vsel %vm647, %v624, 0
    %v664 = vsel %vm647, %v625, 0
    %v667 = vsel %vm647, %v626, 0
    %v670 = vsel %vm647, %v627, 0
    %672 = vmatprep.subr.bf16.mxu0 0
    %673 = vmatpush1.bf16.msra.mxu0 0
    %674 = vmatprep.subr.bf16.mxu0 0
    %675 = vmatpush1.bf16.msra.mxu0 0
    %676 = vmatprep.subr.bf16.mxu0 0
    %677 = vmatpush1.bf16.msra.mxu0 0
    %678 = vmatprep.subr.bf16.mxu0 0
    %679 = vmatpush1.bf16.msra.mxu0 0
    %680 = vmatprep.subr.bf16.mxu0 0
    %681 = vmatpush1.bf16.msra.mxu0 %v639
    %682 = vmatprep.subr.bf16.mxu0 0
    %683 = vmatpush1.bf16.msra.mxu0 %v638
    %684 = vmatprep.subr.bf16.mxu0 0
    %685 = vmatpush1.bf16.msra.mxu0 %v637
    %686 = vmatprep.subr.bf16.mxu0 0
    %687 = vmatpush1.bf16.msra.mxu0 %v636
    %688 = vmatprep.subr.bf16.mxu0 0
    %689 = vmatpush2.bf16.msra.mxu0 0
    %690 = vmatprep.subr.bf16.mxu0 0
    %691 = vmatpush2.bf16.msra.mxu0 0
    %692 = vmatprep.subr.bf16.mxu0 0
    %693 = vmatpush2.bf16.msra.mxu0 0
    %694 = vmatprep.subr.bf16.mxu0 0
    %695 = vmatpush2.bf16.msra.mxu0 0
    %696 = vmatprep.subr.bf16.mxu0 0
    %697 = vmatpush2.bf16.msra.mxu0 0
    %698 = vmatprep.subr.bf16.mxu0 0
    %699 = vmatpush2.bf16.msra.mxu0 0
    %700 = vmatprep.subr.bf16.mxu0 0
    %701 = vmatpush2.bf16.msra.mxu0 0
    %702 = vmatprep.subr.bf16.mxu0 0
    %703 = vmatpush2.bf16.msra.mxu0 0
    %704 = vmatprep.mubr.bf16.mxu0 0
    %705 = vmatmul.mubr.bf16.gmra.mxu0 %v649
    %v706 = vpop.f32.mrf.mxu0
    %v707 = vadd.f32 %v645, %v706
    %v708 = vpop.f32.mrf.mxu0
    %v709 = vpop.f32.mrf.mxu0
    %v710 = vadd.f32 %v645, %v709
    %v711 = vpop.f32.mrf.mxu0
    %712 = vmatprep.mubr.bf16.mxu0 0
    %713 = vmatmul.mubr.bf16.gmra.mxu0 %v652
    %v714 = vpop.f32.mrf.mxu0
    %v715 = vadd.f32 %v645, %v714
    %v716 = vpop.f32.mrf.mxu0
    %v717 = vpop.f32.mrf.mxu0
    %v718 = vadd.f32 %v645, %v717
    %v719 = vpop.f32.mrf.mxu0
    %720 = vmatprep.mubr.bf16.mxu0 0
    %721 = vmatmul.mubr.bf16.gmra.mxu0 %v655
    %v722 = vpop.f32.mrf.mxu0
    %v723 = vadd.f32 %v645, %v722
    %v724 = vpop.f32.mrf.mxu0
    %v725 = vpop.f32.mrf.mxu0
    %v726 = vadd.f32 %v645, %v725
    %v727 = vpop.f32.mrf.mxu0
    %728 = vmatprep.mubr.bf16.mxu0 0
    %729 = vmatmul.mubr.bf16.gmra.mxu0 %v658
    %v730 = vpop.f32.mrf.mxu0
    %v731 = vadd.f32 %v645, %v730
    %v732 = vpop.f32.mrf.mxu0
    %v733 = vpop.f32.mrf.mxu0
    %v734 = vadd.f32 %v645, %v733
    %v735 = vpop.f32.mrf.mxu0
    %736 = vmatprep.mubr.bf16.mxu0 0
    %737 = vmatmul.mubr.bf16.gmra.mxu0 %v661
    %v738 = vpop.f32.mrf.mxu0
    %v739 = vadd.f32 %v645, %v738
    %v740 = vpop.f32.mrf.mxu0
    %v741 = vpop.f32.mrf.mxu0
    %v742 = vadd.f32 %v645, %v741
    %v743 = vpop.f32.mrf.mxu0
    %744 = vmatprep.mubr.bf16.mxu0 0
    %745 = vmatmul.mubr.bf16.gmra.mxu0 %v664
    %v746 = vpop.f32.mrf.mxu0
    %v747 = vadd.f32 %v645, %v746
    %v748 = vpop.f32.mrf.mxu0
    %v749 = vpop.f32.mrf.mxu0
    %v750 = vadd.f32 %v645, %v749
    %v751 = vpop.f32.mrf.mxu0
    %752 = vmatprep.mubr.bf16.mxu0 0
    %753 = vmatmul.mubr.bf16.gmra.mxu0 %v667
    %v754 = vpop.f32.mrf.mxu0
    %v755 = vadd.f32 %v645, %v754
    %v756 = vpop.f32.mrf.mxu0
    %v757 = vpop.f32.mrf.mxu0
    %v758 = vadd.f32 %v645, %v757
    %v759 = vpop.f32.mrf.mxu0
    %760 = vmatprep.mubr.bf16.mxu0 0
    %761 = vmatmul.mubr.bf16.gmra.mxu0 %v670
    %v762 = vpop.f32.mrf.mxu0
    %v763 = vadd.f32 %v645, %v762
    %v764 = vpop.f32.mrf.mxu0
    %v765 = vpop.f32.mrf.mxu0
    %v766 = vadd.f32 %v645, %v765
    %v767 = vpop.f32.mrf.mxu0
    %768 = vdwg.mxu0
    %769 = vst.msk [vmem:[%s7] sm:$0xff] %vm354, %v707
    %770 = vst.msk [vmem:[%s7 + $0x8] sm:$0xff] %vm354, %v710
    %771 = vst.msk [vmem:[%s7 + $0x10] sm:$0xff] %vm354, %v715
    %772 = vst.msk [vmem:[%s7 + $0x18] sm:$0xff] %vm354, %v718
    %773 = vst.msk [vmem:[%s7 + $0x20] sm:$0xff] %vm354, %v723
    %774 = vst.msk [vmem:[%s7 + $0x28] sm:$0xff] %vm354, %v726
    %775 = vst.msk [vmem:[%s7 + $0x30] sm:$0xff] %vm354, %v731
    %776 = vst.msk [vmem:[%s7 + $0x38] sm:$0xff] %vm354, %v734
    %777 = vst.msk [vmem:[%s7 + $0x40] sm:$0xff] %vm354, %v739
    %778 = vst.msk [vmem:[%s7 + $0x48] sm:$0xff] %vm354, %v742
    %779 = vst.msk [vmem:[%s7 + $0x50] sm:$0xff] %vm354, %v747
    %780 = vst.msk [vmem:[%s7 + $0x58] sm:$0xff] %vm354, %v750
    %781 = vst.msk [vmem:[%s7 + $0x60] sm:$0xff] %vm354, %v755
    %782 = vst.msk [vmem:[%s7 + $0x68] sm:$0xff] %vm354, %v758
    %783 = vst.msk [vmem:[%s7 + $0x70] sm:$0xff] %vm354, %v763
    %784 = vst.msk [vmem:[%s7 + $0x78] sm:$0xff] %vm354, %v766
    %v785 = vsel %vm354, %v707, -inf
    %786 = vmax.xlane.f32.xlu0 %v785
    %v787 = vpop.xlane.xlu0 %786
    %v788 = vsel %vm354, %v710, -inf
    %789 = vmax.xlane.f32.xlu0 %v788
    %v790 = vpop.xlane.xlu0 %789
    %v791 = vsel %vm354, %v715, -inf
    %792 = vmax.xlane.f32.xlu0 %v791
    %v793 = vpop.xlane.xlu0 %792
    %v794 = vsel %vm354, %v718, -inf
    %795 = vmax.xlane.f32.xlu0 %v794
    %v796 = vpop.xlane.xlu0 %795
    %v797 = vsel %vm354, %v723, -inf
    %798 = vmax.xlane.f32.xlu0 %v797
    %v799 = vpop.xlane.xlu0 %798
    %v800 = vsel %vm354, %v726, -inf
    %801 = vmax.xlane.f32.xlu0 %v800
    %v802 = vpop.xlane.xlu0 %801
    %v803 = vsel %vm354, %v731, -inf
    %804 = vmax.xlane.f32.xlu0 %v803
    %v805 = vpop.xlane.xlu0 %804
    %v806 = vsel %vm354, %v734, -inf
    %807 = vmax.xlane.f32.xlu0 %v806
    %v808 = vpop.xlane.xlu0 %807
    %v809 = vsel %vm354, %v739, -inf
    %810 = vmax.xlane.f32.xlu0 %v809
    %v811 = vpop.xlane.xlu0 %810
    %v812 = vsel %vm354, %v742, -inf
    %813 = vmax.xlane.f32.xlu0 %v812
    %v814 = vpop.xlane.xlu0 %813
    %v815 = vsel %vm354, %v747, -inf
    %816 = vmax.xlane.f32.xlu0 %v815
    %v817 = vpop.xlane.xlu0 %816
    %v818 = vsel %vm354, %v750, -inf
    %819 = vmax.xlane.f32.xlu0 %v818
    %v820 = vpop.xlane.xlu0 %819
    %v821 = vsel %vm354, %v755, -inf
    %822 = vmax.xlane.f32.xlu0 %v821
    %v823 = vpop.xlane.xlu0 %822
    %v824 = vsel %vm354, %v758, -inf
    %825 = vmax.xlane.f32.xlu0 %v824
    %v826 = vpop.xlane.xlu0 %825
    %v827 = vsel %vm354, %v763, -inf
    %828 = vmax.xlane.f32.xlu0 %v827
    %v829 = vpop.xlane.xlu0 %828
    %v830 = vsel %vm354, %v766, -inf
    %831 = vmax.xlane.f32.xlu0 %v830
    %v832 = vpop.xlane.xlu0 %831
    %v833 = vsub.f32 %v707, %v787
    %v834 = vsub.f32 %v710, %v790
    %v835 = vsub.f32 %v715, %v793
    %v836 = vsub.f32 %v718, %v796
    %v837 = vsub.f32 %v723, %v799
    %v838 = vsub.f32 %v726, %v802
    %v839 = vsub.f32 %v731, %v805
    %v840 = vsub.f32 %v734, %v808
    %v841 = vsub.f32 %v739, %v811
    %v842 = vsub.f32 %v742, %v814
    %v843 = vsub.f32 %v747, %v817
    %v844 = vsub.f32 %v750, %v820
    %v845 = vsub.f32 %v755, %v823
    %v846 = vsub.f32 %v758, %v826
    %v847 = vsub.f32 %v763, %v829
    %v848 = vsub.f32 %v766, %v832
    %v849 = vmul.f32 %v833, 1.442695
    %v850 = vpow.pop %v849
    %v851 = vmul.f32 %v834, 1.442695
    %v852 = vpow.pop %v851
    %v853 = vmul.f32 %v835, 1.442695
    %v854 = vpow.pop %v853
    %v855 = vmul.f32 %v836, 1.442695
    %v856 = vpow.pop %v855
    %v857 = vmul.f32 %v837, 1.442695
    %v858 = vpow.pop %v857
    %v859 = vmul.f32 %v838, 1.442695
    %v860 = vpow.pop %v859
    %v861 = vmul.f32 %v839, 1.442695
    %v862 = vpow.pop %v861
    %v863 = vmul.f32 %v840, 1.442695
    %v864 = vpow.pop %v863
    %v865 = vmul.f32 %v841, 1.442695
    %v866 = vpow.pop %v865
    %v867 = vmul.f32 %v842, 1.442695
    %v868 = vpow.pop %v867
    %v869 = vmul.f32 %v843, 1.442695
    %v870 = vpow.pop %v869
    %v871 = vmul.f32 %v844, 1.442695
    %v872 = vpow.pop %v871
    %v873 = vmul.f32 %v845, 1.442695
    %v874 = vpow.pop %v873
    %v875 = vmul.f32 %v846, 1.442695
    %v876 = vpow.pop %v875
    %v877 = vmul.f32 %v847, 1.442695
    %v878 = vpow.pop %v877
    %v879 = vmul.f32 %v848, 1.442695
    %v880 = vpow.pop %v879
    %v881 = vsel %vm354, %v850, 0.0
    %882 = vadd.xlane.f32.xlu0 %v881
    %v883 = vpop.xlane.xlu0 %882
    %v884 = vsel %vm354, %v852, 0.0
    %885 = vadd.xlane.f32.xlu0 %v884
    %v886 = vpop.xlane.xlu0 %885
    %v887 = vsel %vm354, %v854, 0.0
    %888 = vadd.xlane.f32.xlu0 %v887
    %v889 = vpop.xlane.xlu0 %888
    %v890 = vsel %vm354, %v856, 0.0
    %891 = vadd.xlane.f32.xlu0 %v890
    %v892 = vpop.xlane.xlu0 %891
    %v893 = vsel %vm354, %v858, 0.0
    %894 = vadd.xlane.f32.xlu0 %v893
    %v895 = vpop.xlane.xlu0 %894
    %v896 = vsel %vm354, %v860, 0.0
    %897 = vadd.xlane.f32.xlu0 %v896
    %v898 = vpop.xlane.xlu0 %897
    %v899 = vsel %vm354, %v862, 0.0
    %900 = vadd.xlane.f32.xlu0 %v899
    %v901 = vpop.xlane.xlu0 %900
    %v902 = vsel %vm354, %v864, 0.0
    %903 = vadd.xlane.f32.xlu0 %v902
    %v904 = vpop.xlane.xlu0 %903
    %v905 = vsel %vm354, %v866, 0.0
    %906 = vadd.xlane.f32.xlu0 %v905
    %v907 = vpop.xlane.xlu0 %906
    %v908 = vsel %vm354, %v868, 0.0
    %909 = vadd.xlane.f32.xlu0 %v908
    %v910 = vpop.xlane.xlu0 %909
    %v911 = vsel %vm354, %v870, 0.0
    %912 = vadd.xlane.f32.xlu0 %v911
    %v913 = vpop.xlane.xlu0 %912
    %v914 = vsel %vm354, %v872, 0.0
    %915 = vadd.xlane.f32.xlu0 %v914
    %v916 = vpop.xlane.xlu0 %915
    %v917 = vsel %vm354, %v874, 0.0
    %918 = vadd.xlane.f32.xlu0 %v917
    %v919 = vpop.xlane.xlu0 %918
    %v920 = vsel %vm354, %v876, 0.0
    %921 = vadd.xlane.f32.xlu0 %v920
    %v922 = vpop.xlane.xlu0 %921
    %v923 = vsel %vm354, %v878, 0.0
    %924 = vadd.xlane.f32.xlu0 %v923
    %v925 = vpop.xlane.xlu0 %924
    %v926 = vsel %vm354, %v880, 0.0
    %927 = vadd.xlane.f32.xlu0 %v926
    %v928 = vpop.xlane.xlu0 %927
    %v929 = vrcp.pop %v883
    %v930 = vrcp.pop %v886
    %v931 = vrcp.pop %v889
    %v932 = vrcp.pop %v892
    %v933 = vrcp.pop %v895
    %v934 = vrcp.pop %v898
    %v935 = vrcp.pop %v901
    %v936 = vrcp.pop %v904
    %v937 = vrcp.pop %v907
    %v938 = vrcp.pop %v910
    %v939 = vrcp.pop %v913
    %v940 = vrcp.pop %v916
    %v941 = vrcp.pop %v919
    %v942 = vrcp.pop %v922
    %v943 = vrcp.pop %v925
    %v944 = vrcp.pop %v928
    %v945 = vlog2.pop %v883
    %v946 = vmul.f32 %v945, 0.6931472
    %v947 = vlog2.pop %v886
    %v948 = vmul.f32 %v947, 0.6931472
    %v949 = vlog2.pop %v889
    %v950 = vmul.f32 %v949, 0.6931472
    %v951 = vlog2.pop %v892
    %v952 = vmul.f32 %v951, 0.6931472
    %v953 = vlog2.pop %v895
    %v954 = vmul.f32 %v953, 0.6931472
    %v955 = vlog2.pop %v898
    %v956 = vmul.f32 %v955, 0.6931472
    %v957 = vlog2.pop %v901
    %v958 = vmul.f32 %v957, 0.6931472
    %v959 = vlog2.pop %v904
    %v960 = vmul.f32 %v959, 0.6931472
    %v961 = vlog2.pop %v907
    %v962 = vmul.f32 %v961, 0.6931472
    %v963 = vlog2.pop %v910
    %v964 = vmul.f32 %v963, 0.6931472
    %v965 = vlog2.pop %v913
    %v966 = vmul.f32 %v965, 0.6931472
    %v967 = vlog2.pop %v916
    %v968 = vmul.f32 %v967, 0.6931472
    %v969 = vlog2.pop %v919
    %v970 = vmul.f32 %v969, 0.6931472
    %v971 = vlog2.pop %v922
    %v972 = vmul.f32 %v971, 0.6931472
    %v973 = vlog2.pop %v925
    %v974 = vmul.f32 %v973, 0.6931472
    %v975 = vlog2.pop %v928
    %v976 = vmul.f32 %v975, 0.6931472
    %v977 = vmul.f32 %v850, %v833
    %v978 = vmul.f32 %v852, %v834
    %v979 = vmul.f32 %v854, %v835
    %v980 = vmul.f32 %v856, %v836
    %v981 = vmul.f32 %v858, %v837
    %v982 = vmul.f32 %v860, %v838
    %v983 = vmul.f32 %v862, %v839
    %v984 = vmul.f32 %v864, %v840
    %v985 = vmul.f32 %v866, %v841
    %v986 = vmul.f32 %v868, %v842
    %v987 = vmul.f32 %v870, %v843
    %v988 = vmul.f32 %v872, %v844
    %v989 = vmul.f32 %v874, %v845
    %v990 = vmul.f32 %v876, %v846
    %v991 = vmul.f32 %v878, %v847
    %v992 = vmul.f32 %v880, %v848
    %v993 = vsel %vm354, %v977, 0.0
    %994 = vadd.xlane.f32.xlu0 %v993
    %v995 = vpop.xlane.xlu0 %994
    %v996 = vsel %vm354, %v978, 0.0
    %997 = vadd.xlane.f32.xlu0 %v996
    %v998 = vpop.xlane.xlu0 %997
    %v999 = vsel %vm354, %v979, 0.0
    %1000 = vadd.xlane.f32.xlu0 %v999
    %v1001 = vpop.xlane.xlu0 %1000
    %v1002 = vsel %vm354, %v980, 0.0
    %1003 = vadd.xlane.f32.xlu0 %v1002
    %v1004 = vpop.xlane.xlu0 %1003
    %v1005 = vsel %vm354, %v981, 0.0
    %1006 = vadd.xlane.f32.xlu0 %v1005
    %v1007 = vpop.xlane.xlu0 %1006
    %v1008 = vsel %vm354, %v982, 0.0
    %1009 = vadd.xlane.f32.xlu0 %v1008
    %v1010 = vpop.xlane.xlu0 %1009
    %v1011 = vsel %vm354, %v983, 0.0
    %1012 = vadd.xlane.f32.xlu0 %v1011
    %v1013 = vpop.xlane.xlu0 %1012
    %v1014 = vsel %vm354, %v984, 0.0
    %1015 = vadd.xlane.f32.xlu0 %v1014
    %v1016 = vpop.xlane.xlu0 %1015
    %v1017 = vsel %vm354, %v985, 0.0
    %1018 = vadd.xlane.f32.xlu0 %v1017
    %v1019 = vpop.xlane.xlu0 %1018
    %v1020 = vsel %vm354, %v986, 0.0
    %1021 = vadd.xlane.f32.xlu0 %v1020
    %v1022 = vpop.xlane.xlu0 %1021
    %v1023 = vsel %vm354, %v987, 0.0
    %1024 = vadd.xlane.f32.xlu0 %v1023
    %v1025 = vpop.xlane.xlu0 %1024
    %v1026 = vsel %vm354, %v988, 0.0
    %1027 = vadd.xlane.f32.xlu0 %v1026
    %v1028 = vpop.xlane.xlu0 %1027
    %v1029 = vsel %vm354, %v989, 0.0
    %1030 = vadd.xlane.f32.xlu0 %v1029
    %v1031 = vpop.xlane.xlu0 %1030
    %v1032 = vsel %vm354, %v990, 0.0
    %1033 = vadd.xlane.f32.xlu0 %v1032
    %v1034 = vpop.xlane.xlu0 %1033
    %v1035 = vsel %vm354, %v991, 0.0
    %1036 = vadd.xlane.f32.xlu0 %v1035
    %v1037 = vpop.xlane.xlu0 %1036
    %v1038 = vsel %vm354, %v992, 0.0
    %1039 = vadd.xlane.f32.xlu0 %v1038
    %v1040 = vpop.xlane.xlu0 %1039
    %v1041 = vmul.f32 %v995, %v929
    %v1042 = vmul.f32 %v998, %v930
    %v1043 = vmul.f32 %v1001, %v931
    %v1044 = vmul.f32 %v1004, %v932
    %v1045 = vmul.f32 %v1007, %v933
    %v1046 = vmul.f32 %v1010, %v934
    %v1047 = vmul.f32 %v1013, %v935
    %v1048 = vmul.f32 %v1016, %v936
    %v1049 = vmul.f32 %v1019, %v937
    %v1050 = vmul.f32 %v1022, %v938
    %v1051 = vmul.f32 %v1025, %v939
    %v1052 = vmul.f32 %v1028, %v940
    %v1053 = vmul.f32 %v1031, %v941
    %v1054 = vmul.f32 %v1034, %v942
    %v1055 = vmul.f32 %v1037, %v943
    %v1056 = vmul.f32 %v1040, %v944
    %v1057 = vsub.f32 %v946, %v1041
    %v1058 = vsub.f32 %v948, %v1042
    %v1059 = vsub.f32 %v950, %v1043
    %v1060 = vsub.f32 %v952, %v1044
    %v1061 = vsub.f32 %v954, %v1045
    %v1062 = vsub.f32 %v956, %v1046
    %v1063 = vsub.f32 %v958, %v1047
    %v1064 = vsub.f32 %v960, %v1048
    %v1065 = vsub.f32 %v962, %v1049
    %v1066 = vsub.f32 %v964, %v1050
    %v1067 = vsub.f32 %v966, %v1051
    %v1068 = vsub.f32 %v968, %v1052
    %v1069 = vsub.f32 %v970, %v1053
    %v1070 = vsub.f32 %v972, %v1054
    %v1071 = vsub.f32 %v974, %v1055
    %v1072 = vsub.f32 %v976, %v1056
    %v1073 = vadd.f32 %v1057, %v1058
    %v1074 = vadd.f32 %v1073, %v1059
    %v1075 = vadd.f32 %v1074, %v1060
    %v1076 = vadd.f32 %v1075, %v1061
    %v1077 = vadd.f32 %v1076, %v1062
    %v1078 = vadd.f32 %v1077, %v1063
    %v1079 = vadd.f32 %v1078, %v1064
    %v1080 = vadd.f32 %v1079, %v1065
    %v1081 = vadd.f32 %v1080, %v1066
    %v1082 = vadd.f32 %v1081, %v1067
    %v1083 = vadd.f32 %v1082, %v1068
    %v1084 = vadd.f32 %v1083, %v1069
    %v1085 = vadd.f32 %v1084, %v1070
    %v1086 = vadd.f32 %v1085, %v1071
    %v1087 = vadd.f32 %v1086, %v1072
    %v1088 = vrot.slane %v1087, 4
    %v1089 = vadd.f32 %v1087, %v1088
    %v1090 = vrot.slane %v1089, 2
    %v1091 = vadd.f32 %v1089, %v1090
    %v1092 = vrot.slane %v1091, 1
    %v1093 = vadd.f32 %v1091, %v1092
    %v1094 = vmul.f32 %v1093, 0.0078125
    %vm1095 = vcmask 0
    %1096 = vst.msk [vmem:[#allocation2] sm:$0x1] %vm1095, %v1094
    // Predicated region
    $region30: #{tpu_custom_call.1} parent=1 // pred_check
      _
    $region31: #{tpu_custom_call.1} parent=1 // pred_check_branch
      %1098 = sbr.rel (0) target = $region33
    $region32: #{tpu_custom_call.1} parent=1 // pred_region
      _
    $region33: #{tpu_custom_call.1} parent=1 // pred_fallthru
      _
    // Predicated region
    $region34: #{tpu_custom_call.1} parent=1 // pred_check
      _
    $region35: #{tpu_custom_call.1} parent=1 // pred_check_branch
      %1100 = sbr.rel (0) target = $region37
    $region36: #{tpu_custom_call.1} parent=1 // pred_region
      %s1102 = ssub.s32 16, 16
      %1103 = vsyncadd [#allocation3], %s1102
      %s1105 = sshll.u32 [#allocation2], 4
      %s1106 = int_to_ptr.vmem [resolvable:$true] %s1105
      %1108 = dma.vmem_to_hbm [thread:$0]  %s1106, 16, %s8, [#allocation3]
    $region37: #{tpu_custom_call.1} parent=1 // pred_fallthru
      _
    // Predicated region
    $region38: #{tpu_custom_call.1} parent=1 // pred_check
      _
    $region39: #{tpu_custom_call.1} parent=1 // pred_check_branch
      %1110 = sbr.rel (0) target = $region41
    $region40: #{tpu_custom_call.1} parent=1 // pred_region
      _
    $region41: #{tpu_custom_call.1} parent=1 // pred_fallthru
      _
    // Predicated region
    $region42: #{tpu_custom_call.1} parent=1 // pred_check
      _
    $region43: #{tpu_custom_call.1} parent=1 // pred_check_branch
      %1112 = sbr.rel (0) target = $region45
    $region44: #{tpu_custom_call.1} parent=1 // pred_region
      %1113 = dma.done [#allocation3], 16
    $region45: #{tpu_custom_call.1} parent=1 // pred_fallthru
      _
    %1114 = vsyncpa [#allocation3], 1

</llo_original>
